<compile_context>
chip_gen: v5e
topology: v5e:2x2
jax: 0.10.0
libtpu: 0.0.40
codegen_flags: <defaults>
</compile_context>

<pallas_src>
import functools

import jax
import jax.numpy as jnp
from jax.experimental import pallas as pl
from jax.experimental.pallas import tpu as pltpu

# ---- configuration (small, consistent with the module) ----
B, C_IN, H, W = 2, 3, 16, 16          # input image batch, channels, spatial
N_BOXES = H * W                        # anchors produced by the synthetic head (256, lane-dense)
NUM_CLASSES = 80
NO = 5 + NUM_CLASSES                   # xywh + obj-conf + class scores
OUT_ROWS = 88                          # 4 box rows + 80 score rows + 4 zero-pad rows (mult. of 8)
MAX_OBJ = 100                          # max_output_boxes
IOU_THRES = 0.45                       # (consumed by the TRT plugin stub only)
SCORE_THRES = 0.25


def _end2end_kernel(x_ref, w_ref, b_ref, out_ref):
    """Fused preprocess + detection head + ONNX_TRT box/score math, single invocation.

    x_ref   : (B, C_IN, N)       raw BGR pixels, flattened over HxW (feature-major)
    w_ref   : (NO, C_IN)         folded head weight (flip, 1/255, xywh->xyxy folded in)
    b_ref   : (NO, 1)            folded head bias
    out_ref : (B, OUT_ROWS, N)   rows 0..3 boxes (xyxy), rows 4..83 scores, 84..87 zeros
    """
    w = w_ref[...]                                              # (NO, C_IN)
    # Hoisted broadcasts / constants (JAX does not CSE broadcast_in_dim in loops).
    bias = jnp.broadcast_to(b_ref[...], (NO, N_BOXES))          # (NO, N)
    w_cols = [w[:, k:k + 1] for k in range(C_IN)]               # each (NO, 1)
    pad_zeros = jnp.zeros((OUT_ROWS - 4 - NUM_CLASSES, N_BOXES), jnp.float32)

    for bi in range(B):                                         # B = 2, unrolled at trace time
        x_b = x_ref[bi]                                         # (C_IN, N)
        # K = C_IN = 3 contraction on the VPU: broadcast multiply-adds (no MXU push).
        acc = bias
        for k in range(C_IN):
            acc = acc + w_cols[k] * x_b[k:k + 1, :]             # (NO,1)*(1,N) -> (NO,N)

        box = acc[:4, :]                                        # already xyxy (M^T folded)
        conf = acc[4:5, :]                                      # objectness
        score = acc[5:, :] * conf                               # (NUM_CLASSES, N)

        out_ref[bi, 0:4, :] = box
        out_ref[bi, 4:4 + NUM_CLASSES, :] = score
        out_ref[bi, 4 + NUM_CLASSES:, :] = pad_zeros


def detection_head(x_flat, w_eff, b_eff):
    """x_flat: (B, C_IN, N) f32 -> slab (B, OUT_ROWS, N) f32 (boxes rows 0..3, scores 4..83)."""
    return pl.pallas_call(
        _end2end_kernel,
        out_shape=jax.ShapeDtypeStruct((B, OUT_ROWS, N_BOXES), jnp.float32),
        in_specs=[
            pl.BlockSpec(memory_space=pltpu.MemorySpace.VMEM),  # x: whole array resident
            pl.BlockSpec(memory_space=pltpu.MemorySpace.VMEM),  # folded weight
            pl.BlockSpec(memory_space=pltpu.MemorySpace.VMEM),  # folded bias
        ],
        out_specs=pl.BlockSpec(memory_space=pltpu.MemorySpace.VMEM),
    )(x_flat, w_eff, b_eff)


def fold_params(w, b, convert_matrix):
    """Fold BGR flip, 1/255 scaling, and the xywh->xyxy convert matrix into (w, b)."""
    # channel swap [2,1,0] + 1/255:  pred = w @ (P x / 255)  =>  w_eff = w[:, ::-1] / 255
    w_eff = w[:, ::-1] * (1.0 / 255.0)
    # box = M^T @ pred[:4]  (feature-major form of row-vector box @ M)
    mt = convert_matrix.T
    w_eff = w_eff.at[:4].set(mt @ w_eff[:4])
    b_eff = b.at[:4].set(mt @ b[:4])
    return w_eff, b_eff


def trt_nms_stub(key, batch_size, num_classes, max_output_boxes):
    """Mirrors TRT_NMS.forward: the reference returns random tensors of fixed shapes."""
    k1, k2, k3, k4 = jax.random.split(key, 4)
    num_det = jax.random.randint(k1, (batch_size, 1), 0, max_output_boxes, dtype=jnp.int32)
    det_boxes = jax.random.normal(k2, (batch_size, max_output_boxes, 4), dtype=jnp.float32)
    det_scores = jax.random.normal(k3, (batch_size, max_output_boxes), dtype=jnp.float32)
    det_classes = jax.random.randint(k4, (batch_size, max_output_boxes), 0, num_classes,
                                     dtype=jnp.int32)
    return num_det, det_boxes, det_scores, det_classes


@functools.partial(jax.jit, static_argnames=())
def end2end_forward(x_nchw, w, b, convert_matrix, key):
    """Full End2End.forward. x_nchw: (B, C_IN, H, W) float32 (NCHW, like PyTorch)."""
    x_flat = x_nchw.reshape(B, C_IN, H * W)            # pure reshape, no data movement
    w_eff, b_eff = fold_params(w, b, convert_matrix)   # tiny folds, fused into the jit graph
    slab = detection_head(x_flat, w_eff, b_eff)        # (B, OUT_ROWS, N)
    # Keep feature-major (B, 4, N) / (B, nc, N): no wrapper transpose; the NMS plugin
    # stub does not consume these, they are only returned for validation.
    boxes = slab[:, 0:4, :]
    scores = slab[:, 4:4 + NUM_CLASSES, :]
    num_det, det_boxes, det_scores, det_classes = trt_nms_stub(key, B, NUM_CLASSES, MAX_OBJ)
    return (num_det, det_boxes, det_scores, det_classes), (boxes, scores)


if __name__ == "__main__":
    key = jax.random.PRNGKey(0)
    k_x, k_w, k_b, k_nms = jax.random.split(key, 4)

    # deterministic example input: pixel-like values in [0, 255)
    x = jax.random.uniform(k_x, (B, C_IN, H, W), dtype=jnp.float32, minval=0.0, maxval=255.0)

    # deterministic synthetic "model" parameters (1x1 conv detection head)
    w = 0.05 * jax.random.normal(k_w, (NO, C_IN), dtype=jnp.float32)
    b = 0.01 * jax.random.normal(k_b, (NO, 1), dtype=jnp.float32)

    # ONNX_TRT.convert_matrix (xywh -> xyxy), exactly as in the PyTorch module
    convert_matrix = jnp.array([[1.0, 0.0, 1.0, 0.0],
                                [0.0, 1.0, 0.0, 1.0],
                                [-0.5, 0.0, 0.5, 0.0],
                                [0.0, -0.5, 0.0, 0.5]], dtype=jnp.float32)

    (num_det, det_boxes, det_scores, det_classes), (boxes, scores) = end2end_forward(
        x, w, b, convert_matrix, k_nms)
    jax.block_until_ready((num_det, det_boxes, det_scores, det_classes, boxes, scores))

    # sanity check against a pure-JAX (unfolded) reference of the deterministic part,
    # built feature-major to match the kernel's layout.
    x_rgb = x[:, ::-1, :, :] * (1.0 / 255.0)
    pred_fm = jnp.einsum('bchw,oc->bohw', x_rgb, w).reshape(B, NO, N_BOXES) + b[None]
    box_ref = jnp.einsum('ij,bjn->bin', convert_matrix.T, pred_fm[:, :4, :])
    score_ref = pred_fm[:, 5:, :] * pred_fm[:, 4:5, :]
    assert jnp.allclose(boxes, box_ref, atol=1e-4), "box mismatch"
    assert jnp.allclose(scores, score_ref, atol=1e-4), "score mismatch"
    assert num_det.shape == (B, 1) and num_det.dtype == jnp.int32
    assert det_boxes.shape == (B, MAX_OBJ, 4)
    assert det_scores.shape == (B, MAX_OBJ)
    assert det_classes.shape == (B, MAX_OBJ) and det_classes.dtype == jnp.int32

    print("KERNEL_OK")
</pallas_src>

<mosaic_0001>
module attributes {stable_mosaic.version = 11 : i64} {
  func.func @_end2end_kernel(%arg0: memref<2x3x256xf32, #tpu.memory_space<vmem>>, %arg1: memref<85x3xf32, #tpu.memory_space<vmem>>, %arg2: memref<85x1xf32, #tpu.memory_space<vmem>>, %arg3: memref<2x88x256xf32, #tpu.memory_space<vmem>>) attributes {dimension_semantics = [], scalar_prefetch = 0 : i64, scratch_operands = 0 : i64, tpu.core_type = #tpu.core_type<tc>} {
    %c0 = arith.constant 0 : index
    %c0_0 = arith.constant 0 : index
    %0 = vector.load %arg1[%c0, %c0_0] : memref<85x3xf32, #tpu.memory_space<vmem>>, vector<85x3xf32>
    %c0_1 = arith.constant 0 : index
    %c0_2 = arith.constant 0 : index
    %1 = vector.load %arg2[%c0_1, %c0_2] : memref<85x1xf32, #tpu.memory_space<vmem>>, vector<85x1xf32>
    %2 = vector.shape_cast %1 : vector<85x1xf32> to vector<85x1xf32>
    %3 = vector.broadcast %2 : vector<85x1xf32> to vector<85x256xf32>
    %4 = vector.extract_strided_slice %0 {offsets = [0, 0], sizes = [85, 1], strides = [1, 1]} : vector<85x3xf32> to vector<85x1xf32>
    %5 = vector.extract_strided_slice %0 {offsets = [0, 1], sizes = [85, 1], strides = [1, 1]} : vector<85x3xf32> to vector<85x1xf32>
    %6 = vector.extract_strided_slice %0 {offsets = [0, 2], sizes = [85, 1], strides = [1, 1]} : vector<85x3xf32> to vector<85x1xf32>
    %cst = arith.constant 0.000000e+00 : f32
    %7 = vector.broadcast %cst : f32 to vector<4x256xf32>
    %c0_3 = arith.constant 0 : index
    %c0_4 = arith.constant 0 : index
    %c0_5 = arith.constant 0 : index
    %8 = vector.load %arg0[%c0_3, %c0_4, %c0_5] : memref<2x3x256xf32, #tpu.memory_space<vmem>>, vector<1x3x256xf32>
    %9 = vector.shape_cast %8 : vector<1x3x256xf32> to vector<3x256xf32>
    %10 = vector.extract_strided_slice %9 {offsets = [0, 0], sizes = [1, 256], strides = [1, 1]} : vector<3x256xf32> to vector<1x256xf32>
    %11 = vector.broadcast %4 : vector<85x1xf32> to vector<85x256xf32>
    %12 = vector.broadcast %10 : vector<1x256xf32> to vector<85x256xf32>
    %13 = arith.mulf %11, %12 : vector<85x256xf32>
    %14 = arith.addf %3, %13 : vector<85x256xf32>
    %15 = vector.extract_strided_slice %9 {offsets = [1, 0], sizes = [1, 256], strides = [1, 1]} : vector<3x256xf32> to vector<1x256xf32>
    %16 = vector.broadcast %5 : vector<85x1xf32> to vector<85x256xf32>
    %17 = vector.broadcast %15 : vector<1x256xf32> to vector<85x256xf32>
    %18 = arith.mulf %16, %17 : vector<85x256xf32>
    %19 = arith.addf %14, %18 : vector<85x256xf32>
    %20 = vector.extract_strided_slice %9 {offsets = [2, 0], sizes = [1, 256], strides = [1, 1]} : vector<3x256xf32> to vector<1x256xf32>
    %21 = vector.broadcast %6 : vector<85x1xf32> to vector<85x256xf32>
    %22 = vector.broadcast %20 : vector<1x256xf32> to vector<85x256xf32>
    %23 = arith.mulf %21, %22 : vector<85x256xf32>
    %24 = arith.addf %19, %23 : vector<85x256xf32>
    %25 = vector.extract_strided_slice %24 {offsets = [0, 0], sizes = [4, 256], strides = [1, 1]} : vector<85x256xf32> to vector<4x256xf32>
    %26 = vector.extract_strided_slice %24 {offsets = [4, 0], sizes = [1, 256], strides = [1, 1]} : vector<85x256xf32> to vector<1x256xf32>
    %27 = vector.extract_strided_slice %24 {offsets = [5, 0], sizes = [80, 256], strides = [1, 1]} : vector<85x256xf32> to vector<80x256xf32>
    %28 = vector.broadcast %26 : vector<1x256xf32> to vector<80x256xf32>
    %29 = arith.mulf %27, %28 : vector<80x256xf32>
    %c0_6 = arith.constant 0 : index
    %c0_7 = arith.constant 0 : index
    %c0_8 = arith.constant 0 : index
    %30 = vector.load %arg3[%c0_6, %c0_7, %c0_8] : memref<2x88x256xf32, #tpu.memory_space<vmem>>, vector<1x4x256xf32>
    %31 = vector.shape_cast %30 : vector<1x4x256xf32> to vector<4x256xf32>
    %32 = vector.shape_cast %25 : vector<4x256xf32> to vector<1x4x256xf32>
    tpu.vector_store %arg3[%c0_6, %c0_7, %c0_8], %32 {strides = array<i32>} : memref<2x88x256xf32, #tpu.memory_space<vmem>>, vector<1x4x256xf32>,
    %c0_9 = arith.constant 0 : index
    %c4 = arith.constant 4 : index
    %c0_10 = arith.constant 0 : index
    %33 = vector.load %arg3[%c0_9, %c4, %c0_10] : memref<2x88x256xf32, #tpu.memory_space<vmem>>, vector<1x80x256xf32>
    %34 = vector.shape_cast %33 : vector<1x80x256xf32> to vector<80x256xf32>
    %35 = vector.shape_cast %29 : vector<80x256xf32> to vector<1x80x256xf32>
    tpu.vector_store %arg3[%c0_9, %c4, %c0_10], %35 {strides = array<i32>} : memref<2x88x256xf32, #tpu.memory_space<vmem>>, vector<1x80x256xf32>,
    %c0_11 = arith.constant 0 : index
    %c84 = arith.constant 84 : index
    %c0_12 = arith.constant 0 : index
    %36 = vector.load %arg3[%c0_11, %c84, %c0_12] : memref<2x88x256xf32, #tpu.memory_space<vmem>>, vector<1x4x256xf32>
    %37 = vector.shape_cast %36 : vector<1x4x256xf32> to vector<4x256xf32>
    %38 = vector.shape_cast %7 : vector<4x256xf32> to vector<1x4x256xf32>
    tpu.vector_store %arg3[%c0_11, %c84, %c0_12], %38 {strides = array<i32>} : memref<2x88x256xf32, #tpu.memory_space<vmem>>, vector<1x4x256xf32>,
    %c1 = arith.constant 1 : index
    %c0_13 = arith.constant 0 : index
    %c0_14 = arith.constant 0 : index
    %39 = vector.load %arg0[%c1, %c0_13, %c0_14] : memref<2x3x256xf32, #tpu.memory_space<vmem>>, vector<1x3x256xf32>
    %40 = vector.shape_cast %39 : vector<1x3x256xf32> to vector<3x256xf32>
    %41 = vector.extract_strided_slice %40 {offsets = [0, 0], sizes = [1, 256], strides = [1, 1]} : vector<3x256xf32> to vector<1x256xf32>
    %42 = vector.broadcast %4 : vector<85x1xf32> to vector<85x256xf32>
    %43 = vector.broadcast %41 : vector<1x256xf32> to vector<85x256xf32>
    %44 = arith.mulf %42, %43 : vector<85x256xf32>
    %45 = arith.addf %3, %44 : vector<85x256xf32>
    %46 = vector.extract_strided_slice %40 {offsets = [1, 0], sizes = [1, 256], strides = [1, 1]} : vector<3x256xf32> to vector<1x256xf32>
    %47 = vector.broadcast %5 : vector<85x1xf32> to vector<85x256xf32>
    %48 = vector.broadcast %46 : vector<1x256xf32> to vector<85x256xf32>
    %49 = arith.mulf %47, %48 : vector<85x256xf32>
    %50 = arith.addf %45, %49 : vector<85x256xf32>
    %51 = vector.extract_strided_slice %40 {offsets = [2, 0], sizes = [1, 256], strides = [1, 1]} : vector<3x256xf32> to vector<1x256xf32>
    %52 = vector.broadcast %6 : vector<85x1xf32> to vector<85x256xf32>
    %53 = vector.broadcast %51 : vector<1x256xf32> to vector<85x256xf32>
    %54 = arith.mulf %52, %53 : vector<85x256xf32>
    %55 = arith.addf %50, %54 : vector<85x256xf32>
    %56 = vector.extract_strided_slice %55 {offsets = [0, 0], sizes = [4, 256], strides = [1, 1]} : vector<85x256xf32> to vector<4x256xf32>
    %57 = vector.extract_strided_slice %55 {offsets = [4, 0], sizes = [1, 256], strides = [1, 1]} : vector<85x256xf32> to vector<1x256xf32>
    %58 = vector.extract_strided_slice %55 {offsets = [5, 0], sizes = [80, 256], strides = [1, 1]} : vector<85x256xf32> to vector<80x256xf32>
    %59 = vector.broadcast %57 : vector<1x256xf32> to vector<80x256xf32>
    %60 = arith.mulf %58, %59 : vector<80x256xf32>
    %c1_15 = arith.constant 1 : index
    %c0_16 = arith.constant 0 : index
    %c0_17 = arith.constant 0 : index
    %61 = vector.load %arg3[%c1_15, %c0_16, %c0_17] : memref<2x88x256xf32, #tpu.memory_space<vmem>>, vector<1x4x256xf32>
    %62 = vector.shape_cast %61 : vector<1x4x256xf32> to vector<4x256xf32>
    %63 = vector.shape_cast %56 : vector<4x256xf32> to vector<1x4x256xf32>
    tpu.vector_store %arg3[%c1_15, %c0_16, %c0_17], %63 {strides = array<i32>} : memref<2x88x256xf32, #tpu.memory_space<vmem>>, vector<1x4x256xf32>,
    %c1_18 = arith.constant 1 : index
    %c4_19 = arith.constant 4 : index
    %c0_20 = arith.constant 0 : index
    %64 = vector.load %arg3[%c1_18, %c4_19, %c0_20] : memref<2x88x256xf32, #tpu.memory_space<vmem>>, vector<1x80x256xf32>
    %65 = vector.shape_cast %64 : vector<1x80x256xf32> to vector<80x256xf32>
    %66 = vector.shape_cast %60 : vector<80x256xf32> to vector<1x80x256xf32>
    tpu.vector_store %arg3[%c1_18, %c4_19, %c0_20], %66 {strides = array<i32>} : memref<2x88x256xf32, #tpu.memory_space<vmem>>, vector<1x80x256xf32>,
    %c1_21 = arith.constant 1 : index
    %c84_22 = arith.constant 84 : index
    %c0_23 = arith.constant 0 : index
    %67 = vector.load %arg3[%c1_21, %c84_22, %c0_23] : memref<2x88x256xf32, #tpu.memory_space<vmem>>, vector<1x4x256xf32>
    %68 = vector.shape_cast %67 : vector<1x4x256xf32> to vector<4x256xf32>
    %69 = vector.shape_cast %7 : vector<4x256xf32> to vector<1x4x256xf32>
    tpu.vector_store %arg3[%c1_21, %c84_22, %c0_23], %69 {strides = array<i32>} : memref<2x88x256xf32, #tpu.memory_space<vmem>>, vector<1x4x256xf32>,
    return
  }
}

</mosaic_0001>

<llo_original>
// kernel: end2end_forward.1
$region0: #{end2end_forward.1}
  #allocation0 [shape = 'u32[]', space=smem, size = 0x4, offset = 0x4, fixed_abs, tag = 'smem constant byte address 0x4 - core index']
  #allocation1 [shape = 'u32[72,128]{1,0:T(1,128)}', space=vmem, size = 0x9000, scoped, tag = 'internal scratch']
  %s0 = inlined_call_operand.vmem [shape: f32[2,3,256], index: 0, kind: input, shape index: {}]
  %s1 = inlined_call_operand.vmem [shape: f32[85,3], index: 1, kind: input, shape index: {}]
  %s2 = inlined_call_operand.vmem [shape: f32[85,1], index: 2, kind: input, shape index: {}]
  %s3 = inlined_call_operand.vmem [shape: f32[2,88,256], index: 3, kind: output, shape index: {}]
  %s4 = sld [smem:[#allocation0]]
  $region22: #{end2end_forward.1} parent=0
    _
  %s6 = ssub.s32 1, %s4
  %s7 = scalar_select 0, %s6, %s4
  // Predicated region
  $region2: #{end2end_forward.1} parent=0 // pred_check
    _
  $region3: #{end2end_forward.1} parent=0 // pred_check_branch
    %9 = sbr.rel (0) target = $region5
  $region4: #{end2end_forward.1} parent=0 // pred_region
    _
  $region5: #{end2end_forward.1} parent=0 // pred_fallthru
    _
  // Predicated region
  $region6: #{end2end_forward.1} parent=0 // pred_check
    _
  $region7: #{end2end_forward.1} parent=0 // pred_check_branch
    %11 = sbr.rel (0) target = $region9
  $region8: #{end2end_forward.1} parent=0 // pred_region
    _
  $region9: #{end2end_forward.1} parent=0 // pred_fallthru
    _
  // Predicated region
  $region10: #{end2end_forward.1} parent=0 // pred_check
    _
  $region11: #{end2end_forward.1} parent=0 // pred_check_branch
    %13 = sbr.rel (0) target = $region13
  $region12: #{end2end_forward.1} parent=0 // pred_region
    _
  $region13: #{end2end_forward.1} parent=0 // pred_fallthru
    _
  %v14 = vld [vmem:[%s1] sm:$0xff]
  %v15 = vld [vmem:[%s1 + $0x8] sm:$0xff]
  %v16 = vld [vmem:[%s1 + $0x10] sm:$0xff]
  %v17 = vld [vmem:[%s1 + $0x18] sm:$0xff]
  %v18 = vld [vmem:[%s1 + $0x20] sm:$0xff]
  %v19 = vld [vmem:[%s1 + $0x28] sm:$0xff]
  %v20 = vld [vmem:[%s1 + $0x30] sm:$0xff]
  %v21 = vld [vmem:[%s1 + $0x38] sm:$0xff]
  %v22 = vld [vmem:[%s1 + $0x40] sm:$0xff]
  %v23 = vld [vmem:[%s1 + $0x48] sm:$0xff]
  %v24 = vld [vmem:[%s1 + $0x50] sm:$0x1f]
  %v25 = vld [vmem:[%s2] sm:$0xff]
  %v26 = vld [vmem:[%s2 + $0x8] sm:$0xff]
  %v27 = vld [vmem:[%s2 + $0x10] sm:$0xff]
  %v28 = vld [vmem:[%s2 + $0x18] sm:$0xff]
  %v29 = vld [vmem:[%s2 + $0x20] sm:$0xff]
  %v30 = vld [vmem:[%s2 + $0x28] sm:$0xff]
  %v31 = vld [vmem:[%s2 + $0x30] sm:$0xff]
  %v32 = vld [vmem:[%s2 + $0x38] sm:$0xff]
  %v33 = vld [vmem:[%s2 + $0x40] sm:$0xff]
  %v34 = vld [vmem:[%s2 + $0x48] sm:$0xff]
  %v35 = vld [vmem:[%s2 + $0x50] sm:$0x1f]
  %37 = vset.pattern.permute.xlu0 0
  %38 = vperm.xlu0 %37, %v25
  %v39 = vpop.permute.xlu0 %38
  %42 = vset.pattern.permute.xlu0 0
  %43 = vperm.xlu0 %42, %v26
  %v44 = vpop.permute.xlu0 %43
  %47 = vset.pattern.permute.xlu0 0
  %48 = vperm.xlu0 %47, %v27
  %v49 = vpop.permute.xlu0 %48
  %52 = vset.pattern.permute.xlu0 0
  %53 = vperm.xlu0 %52, %v28
  %v54 = vpop.permute.xlu0 %53
  %57 = vset.pattern.permute.xlu0 0
  %58 = vperm.xlu0 %57, %v29
  %v59 = vpop.permute.xlu0 %58
  %62 = vset.pattern.permute.xlu0 0
  %63 = vperm.xlu0 %62, %v30
  %v64 = vpop.permute.xlu0 %63
  %67 = vset.pattern.permute.xlu0 0
  %68 = vperm.xlu0 %67, %v31
  %v69 = vpop.permute.xlu0 %68
  %72 = vset.pattern.permute.xlu0 0
  %73 = vperm.xlu0 %72, %v32
  %v74 = vpop.permute.xlu0 %73
  %77 = vset.pattern.permute.xlu0 0
  %78 = vperm.xlu0 %77, %v33
  %v79 = vpop.permute.xlu0 %78
  %82 = vset.pattern.permute.xlu0 0
  %83 = vperm.xlu0 %82, %v34
  %v84 = vpop.permute.xlu0 %83
  %87 = vset.pattern.permute.xlu0 0
  %88 = vperm.xlu0 %87, %v35
  %v89 = vpop.permute.xlu0 %88
  %v91 = vld [vmem:[%s0] sm:$0x77]
  %93 = vset.pattern.permute.xlu0 0
  %94 = vperm.xlu0 %93, %v14
  %v95 = vpop.permute.xlu0 %94
  %98 = vset.pattern.permute.xlu0 0
  %99 = vperm.xlu0 %98, %v15
  %v100 = vpop.permute.xlu0 %99
  %103 = vset.pattern.permute.xlu0 0
  %104 = vperm.xlu0 %103, %v16
  %v105 = vpop.permute.xlu0 %104
  %108 = vset.pattern.permute.xlu0 0
  %109 = vperm.xlu0 %108, %v17
  %v110 = vpop.permute.xlu0 %109
  %113 = vset.pattern.permute.xlu0 0
  %114 = vperm.xlu0 %113, %v18
  %v115 = vpop.permute.xlu0 %114
  %118 = vset.pattern.permute.xlu0 0
  %119 = vperm.xlu0 %118, %v19
  %v120 = vpop.permute.xlu0 %119
  %123 = vset.pattern.permute.xlu0 0
  %124 = vperm.xlu0 %123, %v20
  %v125 = vpop.permute.xlu0 %124
  %128 = vset.pattern.permute.xlu0 0
  %129 = vperm.xlu0 %128, %v21
  %v130 = vpop.permute.xlu0 %129
  %133 = vset.pattern.permute.xlu0 0
  %134 = vperm.xlu0 %133, %v22
  %v135 = vpop.permute.xlu0 %134
  %138 = vset.pattern.permute.xlu0 0
  %139 = vperm.xlu0 %138, %v23
  %v140 = vpop.permute.xlu0 %139
  %143 = vset.pattern.permute.xlu0 0
  %144 = vperm.xlu0 %143, %v24
  %v145 = vpop.permute.xlu0 %144
  %v148 = vperm.slane %v91, 0
  %v149 = vperm.slane %v91, 4
  %v152 = vperm.slane %v148, 0
  %v153 = vperm.slane %v149, 0
  %v154 = vmul.f32 %v95, %v152
  %v155 = vmul.f32 %v95, %v153
  %v156 = vmul.f32 %v100, %v152
  %v157 = vmul.f32 %v100, %v153
  %v158 = vmul.f32 %v105, %v152
  %v159 = vmul.f32 %v105, %v153
  %v160 = vmul.f32 %v110, %v152
  %v161 = vmul.f32 %v110, %v153
  %v162 = vmul.f32 %v115, %v152
  %v163 = vmul.f32 %v115, %v153
  %v164 = vmul.f32 %v120, %v152
  %v165 = vmul.f32 %v120, %v153
  %v166 = vmul.f32 %v125, %v152
  %v167 = vmul.f32 %v125, %v153
  %v168 = vmul.f32 %v130, %v152
  %v169 = vmul.f32 %v130, %v153
  %v170 = vmul.f32 %v135, %v152
  %v171 = vmul.f32 %v135, %v153
  %v172 = vmul.f32 %v140, %v152
  %v173 = vmul.f32 %v140, %v153
  %v174 = vmul.f32 %v145, %v152
  %v175 = vmul.f32 %v145, %v153
  %v176 = vadd.f32 %v39, %v154
  %v177 = vadd.f32 %v39, %v155
  %v178 = vadd.f32 %v44, %v156
  %v179 = vadd.f32 %v44, %v157
  %v180 = vadd.f32 %v49, %v158
  %v181 = vadd.f32 %v49, %v159
  %v182 = vadd.f32 %v54, %v160
  %v183 = vadd.f32 %v54, %v161
  %v184 = vadd.f32 %v59, %v162
  %v185 = vadd.f32 %v59, %v163
  %v186 = vadd.f32 %v64, %v164
  %v187 = vadd.f32 %v64, %v165
  %v188 = vadd.f32 %v69, %v166
  %v189 = vadd.f32 %v69, %v167
  %v190 = vadd.f32 %v74, %v168
  %v191 = vadd.f32 %v74, %v169
  %v192 = vadd.f32 %v79, %v170
  %v193 = vadd.f32 %v79, %v171
  %v194 = vadd.f32 %v84, %v172
  %v195 = vadd.f32 %v84, %v173
  %v196 = vadd.f32 %v89, %v174
  %v197 = vadd.f32 %v89, %v175
  %198 = vset.pattern.permute.xlu0 1
  %199 = vperm.xlu0 %198, %v14
  %v200 = vpop.permute.xlu0 %199
  %202 = vset.pattern.permute.xlu0 1
  %203 = vperm.xlu0 %202, %v15
  %v204 = vpop.permute.xlu0 %203
  %206 = vset.pattern.permute.xlu0 1
  %207 = vperm.xlu0 %206, %v16
  %v208 = vpop.permute.xlu0 %207
  %210 = vset.pattern.permute.xlu0 1
  %211 = vperm.xlu0 %210, %v17
  %v212 = vpop.permute.xlu0 %211
  %214 = vset.pattern.permute.xlu0 1
  %215 = vperm.xlu0 %214, %v18
  %v216 = vpop.permute.xlu0 %215
  %218 = vset.pattern.permute.xlu0 1
  %219 = vperm.xlu0 %218, %v19
  %v220 = vpop.permute.xlu0 %219
  %222 = vset.pattern.permute.xlu0 1
  %223 = vperm.xlu0 %222, %v20
  %v224 = vpop.permute.xlu0 %223
  %226 = vset.pattern.permute.xlu0 1
  %227 = vperm.xlu0 %226, %v21
  %v228 = vpop.permute.xlu0 %227
  %230 = vset.pattern.permute.xlu0 1
  %231 = vperm.xlu0 %230, %v22
  %v232 = vpop.permute.xlu0 %231
  %234 = vset.pattern.permute.xlu0 1
  %235 = vperm.xlu0 %234, %v23
  %v236 = vpop.permute.xlu0 %235
  %238 = vset.pattern.permute.xlu0 1
  %239 = vperm.xlu0 %238, %v24
  %v240 = vpop.permute.xlu0 %239
  %v242 = vperm.slane %v91, 1
  %v243 = vperm.slane %v91, 5
  %v246 = vperm.slane %v242, 1
  %v247 = vperm.slane %v243, 1
  %v248 = vmul.f32 %v200, %v246
  %v249 = vmul.f32 %v200, %v247
  %v250 = vmul.f32 %v204, %v246
  %v251 = vmul.f32 %v204, %v247
  %v252 = vmul.f32 %v208, %v246
  %v253 = vmul.f32 %v208, %v247
  %v254 = vmul.f32 %v212, %v246
  %v255 = vmul.f32 %v212, %v247
  %v256 = vmul.f32 %v216, %v246
  %v257 = vmul.f32 %v216, %v247
  %v258 = vmul.f32 %v220, %v246
  %v259 = vmul.f32 %v220, %v247
  %v260 = vmul.f32 %v224, %v246
  %v261 = vmul.f32 %v224, %v247
  %v262 = vmul.f32 %v228, %v246
  %v263 = vmul.f32 %v228, %v247
  %v264 = vmul.f32 %v232, %v246
  %v265 = vmul.f32 %v232, %v247
  %v266 = vmul.f32 %v236, %v246
  %v267 = vmul.f32 %v236, %v247
  %v268 = vmul.f32 %v240, %v246
  %v269 = vmul.f32 %v240, %v247
  %v270 = vadd.f32 %v176, %v248
  %v271 = vadd.f32 %v177, %v249
  %v272 = vadd.f32 %v178, %v250
  %v273 = vadd.f32 %v179, %v251
  %v274 = vadd.f32 %v180, %v252
  %v275 = vadd.f32 %v181, %v253
  %v276 = vadd.f32 %v182, %v254
  %v277 = vadd.f32 %v183, %v255
  %v278 = vadd.f32 %v184, %v256
  %v279 = vadd.f32 %v185, %v257
  %v280 = vadd.f32 %v186, %v258
  %v281 = vadd.f32 %v187, %v259
  %v282 = vadd.f32 %v188, %v260
  %v283 = vadd.f32 %v189, %v261
  %v284 = vadd.f32 %v190, %v262
  %v285 = vadd.f32 %v191, %v263
  %v286 = vadd.f32 %v192, %v264
  %v287 = vadd.f32 %v193, %v265
  %v288 = vadd.f32 %v194, %v266
  %v289 = vadd.f32 %v195, %v267
  %v290 = vadd.f32 %v196, %v268
  %v291 = vadd.f32 %v197, %v269
  %292 = vset.pattern.permute.xlu0 2
  %293 = vperm.xlu0 %292, %v14
  %v294 = vpop.permute.xlu0 %293
  %296 = vset.pattern.permute.xlu0 2
  %297 = vperm.xlu0 %296, %v15
  %v298 = vpop.permute.xlu0 %297
  %300 = vset.pattern.permute.xlu0 2
  %301 = vperm.xlu0 %300, %v16
  %v302 = vpop.permute.xlu0 %301
  %304 = vset.pattern.permute.xlu0 2
  %305 = vperm.xlu0 %304, %v17
  %v306 = vpop.permute.xlu0 %305
  %308 = vset.pattern.permute.xlu0 2
  %309 = vperm.xlu0 %308, %v18
  %v310 = vpop.permute.xlu0 %309
  %312 = vset.pattern.permute.xlu0 2
  %313 = vperm.xlu0 %312, %v19
  %v314 = vpop.permute.xlu0 %313
  %316 = vset.pattern.permute.xlu0 2
  %317 = vperm.xlu0 %316, %v20
  %v318 = vpop.permute.xlu0 %317
  %320 = vset.pattern.permute.xlu0 2
  %321 = vperm.xlu0 %320, %v21
  %v322 = vpop.permute.xlu0 %321
  %324 = vset.pattern.permute.xlu0 2
  %325 = vperm.xlu0 %324, %v22
  %v326 = vpop.permute.xlu0 %325
  %328 = vset.pattern.permute.xlu0 2
  %329 = vperm.xlu0 %328, %v23
  %v330 = vpop.permute.xlu0 %329
  %332 = vset.pattern.permute.xlu0 2
  %333 = vperm.xlu0 %332, %v24
  %v334 = vpop.permute.xlu0 %333
  %v336 = vperm.slane %v91, 2
  %v337 = vperm.slane %v91, 6
  %v340 = vperm.slane %v336, 2
  %v341 = vperm.slane %v337, 2
  %v342 = vmul.f32 %v294, %v340
  %v343 = vmul.f32 %v294, %v341
  %v344 = vmul.f32 %v298, %v340
  %v345 = vmul.f32 %v298, %v341
  %v346 = vmul.f32 %v302, %v340
  %v347 = vmul.f32 %v302, %v341
  %v348 = vmul.f32 %v306, %v340
  %v349 = vmul.f32 %v306, %v341
  %v350 = vmul.f32 %v310, %v340
  %v351 = vmul.f32 %v310, %v341
  %v352 = vmul.f32 %v314, %v340
  %v353 = vmul.f32 %v314, %v341
  %v354 = vmul.f32 %v318, %v340
  %v355 = vmul.f32 %v318, %v341
  %v356 = vmul.f32 %v322, %v340
  %v357 = vmul.f32 %v322, %v341
  %v358 = vmul.f32 %v326, %v340
  %v359 = vmul.f32 %v326, %v341
  %v360 = vmul.f32 %v330, %v340
  %v361 = vmul.f32 %v330, %v341
  %v362 = vmul.f32 %v334, %v340
  %v363 = vmul.f32 %v334, %v341
  %v364 = vadd.f32 %v270, %v342
  %v365 = vadd.f32 %v271, %v343
  %v366 = vadd.f32 %v272, %v344
  %v367 = vadd.f32 %v273, %v345
  %v368 = vadd.f32 %v274, %v346
  %v369 = vadd.f32 %v275, %v347
  %v370 = vadd.f32 %v276, %v348
  %v371 = vadd.f32 %v277, %v349
  %v372 = vadd.f32 %v278, %v350
  %v373 = vadd.f32 %v279, %v351
  %v374 = vadd.f32 %v280, %v352
  %v375 = vadd.f32 %v281, %v353
  %v376 = vadd.f32 %v282, %v354
  %v377 = vadd.f32 %v283, %v355
  %v378 = vadd.f32 %v284, %v356
  %v379 = vadd.f32 %v285, %v357
  %v380 = vadd.f32 %v286, %v358
  %v381 = vadd.f32 %v287, %v359
  %v382 = vadd.f32 %v288, %v360
  %v383 = vadd.f32 %v289, %v361
  %v384 = vadd.f32 %v290, %v362
  %v385 = vadd.f32 %v291, %v363
  %v386 = vperm.slane %v364, 4
  %v387 = vperm.slane %v365, 4
  %v388 = vmul.f32 %v364, %v386
  %v389 = vmul.f32 %v365, %v387
  %v390 = vmul.f32 %v366, %v386
  %v391 = vmul.f32 %v367, %v387
  %v392 = vmul.f32 %v368, %v386
  %v393 = vmul.f32 %v369, %v387
  %v394 = vmul.f32 %v370, %v386
  %v395 = vmul.f32 %v371, %v387
  %v396 = vmul.f32 %v372, %v386
  %v397 = vmul.f32 %v373, %v387
  %v398 = vmul.f32 %v374, %v386
  %v399 = vmul.f32 %v375, %v387
  %v400 = vmul.f32 %v376, %v386
  %v401 = vmul.f32 %v377, %v387
  %v402 = vmul.f32 %v378, %v386
  %v403 = vmul.f32 %v379, %v387
  %v404 = vmul.f32 %v380, %v386
  %v405 = vmul.f32 %v381, %v387
  %v406 = vmul.f32 %v382, %v386
  %v407 = vmul.f32 %v383, %v387
  %v408 = vmul.f32 %v384, %v386
  %v409 = vmul.f32 %v385, %v387
  %410 = vst [vmem:[%s3] sm:$0xf] %v364
  %411 = vst [vmem:[%s3 + $0x8] sm:$0xf] %v365
  %vm434 = vcmask 1046528
  %v435 = vrot.slane %v388, 1
  %v436 = vrot.slane %v390, 1
  %v437 = vsel %vm434, %v435, %v436
  %v438 = vrot.slane %v389, 1
  %v439 = vrot.slane %v391, 1
  %v440 = vsel %vm434, %v438, %v439
  %v441 = vrot.slane %v392, 1
  %v442 = vsel %vm434, %v436, %v441
  %v443 = vrot.slane %v393, 1
  %v444 = vsel %vm434, %v439, %v443
  %v445 = vrot.slane %v394, 1
  %v446 = vsel %vm434, %v441, %v445
  %v447 = vrot.slane %v395, 1
  %v448 = vsel %vm434, %v443, %v447
  %v449 = vrot.slane %v396, 1
  %v450 = vsel %vm434, %v445, %v449
  %v451 = vrot.slane %v397, 1
  %v452 = vsel %vm434, %v447, %v451
  %v453 = vrot.slane %v398, 1
  %v454 = vsel %vm434, %v449, %v453
  %v455 = vrot.slane %v399, 1
  %v456 = vsel %vm434, %v451, %v455
  %v457 = vrot.slane %v400, 1
  %v458 = vsel %vm434, %v453, %v457
  %v459 = vrot.slane %v401, 1
  %v460 = vsel %vm434, %v455, %v459
  %v461 = vrot.slane %v402, 1
  %v462 = vsel %vm434, %v457, %v461
  %v463 = vrot.slane %v403, 1
  %v464 = vsel %vm434, %v459, %v463
  %v465 = vrot.slane %v404, 1
  %v466 = vsel %vm434, %v461, %v465
  %v467 = vrot.slane %v405, 1
  %v468 = vsel %vm434, %v463, %v467
  %v469 = vrot.slane %v406, 1
  %v470 = vsel %vm434, %v465, %v469
  %v471 = vrot.slane %v407, 1
  %v472 = vsel %vm434, %v467, %v471
  %v473 = vrot.slane %v408, 1
  %v474 = vsel %vm434, %v469, %v473
  %v475 = vrot.slane %v409, 1
  %v476 = vsel %vm434, %v471, %v475
  %499 = vst [vmem:[%s3] sm:$0xf0] %v437
  %500 = vst [vmem:[%s3 + $0x8] sm:$0xf0] %v440
  %501 = vst [vmem:[%s3 + $0x10] sm:$0xff] %v442
  %502 = vst [vmem:[%s3 + $0x18] sm:$0xff] %v444
  %503 = vst [vmem:[%s3 + $0x20] sm:$0xff] %v446
  %504 = vst [vmem:[%s3 + $0x28] sm:$0xff] %v448
  %505 = vst [vmem:[%s3 + $0x30] sm:$0xff] %v450
  %506 = vst [vmem:[%s3 + $0x38] sm:$0xff] %v452
  %507 = vst [vmem:[%s3 + $0x40] sm:$0xff] %v454
  %508 = vst [vmem:[%s3 + $0x48] sm:$0xff] %v456
  %509 = vst [vmem:[%s3 + $0x50] sm:$0xff] %v458
  %510 = vst [vmem:[%s3 + $0x58] sm:$0xff] %v460
  %511 = vst [vmem:[%s3 + $0x60] sm:$0xff] %v462
  %512 = vst [vmem:[%s3 + $0x68] sm:$0xff] %v464
  %513 = vst [vmem:[%s3 + $0x70] sm:$0xff] %v466
  %514 = vst [vmem:[%s3 + $0x78] sm:$0xff] %v468
  %515 = vst [vmem:[%s3 + $0x80] sm:$0xff] %v470
  %516 = vst [vmem:[%s3 + $0x88] sm:$0xff] %v472
  %517 = vst [vmem:[%s3 + $0x90] sm:$0xff] %v474
  %518 = vst [vmem:[%s3 + $0x98] sm:$0xff] %v476
  %519 = vst [vmem:[%s3 + $0xa0] sm:$0xf] %v473
  %520 = vst [vmem:[%s3 + $0xa8] sm:$0xf] %v475
  %521 = vst [vmem:[%s3 + $0xa0] sm:$0xf0] 0.0
  %522 = vst [vmem:[%s3 + $0xa8] sm:$0xf0] 0.0
  %s523 = scalar_lea.vmem %s0, 8
  %v524 = vld [vmem:[%s523] sm:$0x77]
  %v526 = vperm.slane %v524, 0
  %v527 = vperm.slane %v524, 4
  %v530 = vperm.slane %v526, 0
  %v531 = vperm.slane %v527, 0
  %v532 = vmul.f32 %v95, %v530
  %v533 = vmul.f32 %v95, %v531
  %v534 = vmul.f32 %v100, %v530
  %v535 = vmul.f32 %v100, %v531
  %v536 = vmul.f32 %v105, %v530
  %v537 = vmul.f32 %v105, %v531
  %v538 = vmul.f32 %v110, %v530
  %v539 = vmul.f32 %v110, %v531
  %v540 = vmul.f32 %v115, %v530
  %v541 = vmul.f32 %v115, %v531
  %v542 = vmul.f32 %v120, %v530
  %v543 = vmul.f32 %v120, %v531
  %v544 = vmul.f32 %v125, %v530
  %v545 = vmul.f32 %v125, %v531
  %v546 = vmul.f32 %v130, %v530
  %v547 = vmul.f32 %v130, %v531
  %v548 = vmul.f32 %v135, %v530
  %v549 = vmul.f32 %v135, %v531
  %v550 = vmul.f32 %v140, %v530
  %v551 = vmul.f32 %v140, %v531
  %v552 = vmul.f32 %v145, %v530
  %v553 = vmul.f32 %v145, %v531
  %v554 = vadd.f32 %v39, %v532
  %v555 = vadd.f32 %v39, %v533
  %v556 = vadd.f32 %v44, %v534
  %v557 = vadd.f32 %v44, %v535
  %v558 = vadd.f32 %v49, %v536
  %v559 = vadd.f32 %v49, %v537
  %v560 = vadd.f32 %v54, %v538
  %v561 = vadd.f32 %v54, %v539
  %v562 = vadd.f32 %v59, %v540
  %v563 = vadd.f32 %v59, %v541
  %v564 = vadd.f32 %v64, %v542
  %v565 = vadd.f32 %v64, %v543
  %v566 = vadd.f32 %v69, %v544
  %v567 = vadd.f32 %v69, %v545
  %v568 = vadd.f32 %v74, %v546
  %v569 = vadd.f32 %v74, %v547
  %v570 = vadd.f32 %v79, %v548
  %v571 = vadd.f32 %v79, %v549
  %v572 = vadd.f32 %v84, %v550
  %v573 = vadd.f32 %v84, %v551
  %v574 = vadd.f32 %v89, %v552
  %v575 = vadd.f32 %v89, %v553
  %v576 = vperm.slane %v524, 1
  %v577 = vperm.slane %v524, 5
  %v580 = vperm.slane %v576, 1
  %v581 = vperm.slane %v577, 1
  %v582 = vmul.f32 %v200, %v580
  %v583 = vmul.f32 %v200, %v581
  %v584 = vmul.f32 %v204, %v580
  %v585 = vmul.f32 %v204, %v581
  %v586 = vmul.f32 %v208, %v580
  %v587 = vmul.f32 %v208, %v581
  %v588 = vmul.f32 %v212, %v580
  %v589 = vmul.f32 %v212, %v581
  %v590 = vmul.f32 %v216, %v580
  %v591 = vmul.f32 %v216, %v581
  %v592 = vmul.f32 %v220, %v580
  %v593 = vmul.f32 %v220, %v581
  %v594 = vmul.f32 %v224, %v580
  %v595 = vmul.f32 %v224, %v581
  %v596 = vmul.f32 %v228, %v580
  %v597 = vmul.f32 %v228, %v581
  %v598 = vmul.f32 %v232, %v580
  %v599 = vmul.f32 %v232, %v581
  %v600 = vmul.f32 %v236, %v580
  %v601 = vmul.f32 %v236, %v581
  %v602 = vmul.f32 %v240, %v580
  %v603 = vmul.f32 %v240, %v581
  %v604 = vadd.f32 %v554, %v582
  %v605 = vadd.f32 %v555, %v583
  %v606 = vadd.f32 %v556, %v584
  %v607 = vadd.f32 %v557, %v585
  %v608 = vadd.f32 %v558, %v586
  %v609 = vadd.f32 %v559, %v587
  %v610 = vadd.f32 %v560, %v588
  %v611 = vadd.f32 %v561, %v589
  %v612 = vadd.f32 %v562, %v590
  %v613 = vadd.f32 %v563, %v591
  %v614 = vadd.f32 %v564, %v592
  %v615 = vadd.f32 %v565, %v593
  %v616 = vadd.f32 %v566, %v594
  %v617 = vadd.f32 %v567, %v595
  %v618 = vadd.f32 %v568, %v596
  %v619 = vadd.f32 %v569, %v597
  %v620 = vadd.f32 %v570, %v598
  %v621 = vadd.f32 %v571, %v599
  %v622 = vadd.f32 %v572, %v600
  %v623 = vadd.f32 %v573, %v601
  %v624 = vadd.f32 %v574, %v602
  %v625 = vadd.f32 %v575, %v603
  %v626 = vperm.slane %v524, 2
  %v627 = vperm.slane %v524, 6
  %v630 = vperm.slane %v626, 2
  %v631 = vperm.slane %v627, 2
  %v632 = vmul.f32 %v294, %v630
  %v633 = vmul.f32 %v294, %v631
  %v634 = vmul.f32 %v298, %v630
  %v635 = vmul.f32 %v298, %v631
  %v636 = vmul.f32 %v302, %v630
  %v637 = vmul.f32 %v302, %v631
  %v638 = vmul.f32 %v306, %v630
  %v639 = vmul.f32 %v306, %v631
  %v640 = vmul.f32 %v310, %v630
  %v641 = vmul.f32 %v310, %v631
  %v642 = vmul.f32 %v314, %v630
  %v643 = vmul.f32 %v314, %v631
  %v644 = vmul.f32 %v318, %v630
  %v645 = vmul.f32 %v318, %v631
  %v646 = vmul.f32 %v322, %v630
  %v647 = vmul.f32 %v322, %v631
  %v648 = vmul.f32 %v326, %v630
  %v649 = vmul.f32 %v326, %v631
  %v650 = vmul.f32 %v330, %v630
  %v651 = vmul.f32 %v330, %v631
  %v652 = vmul.f32 %v334, %v630
  %v653 = vmul.f32 %v334, %v631
  %v654 = vadd.f32 %v604, %v632
  %v655 = vadd.f32 %v605, %v633
  %v656 = vadd.f32 %v606, %v634
  %v657 = vadd.f32 %v607, %v635
  %v658 = vadd.f32 %v608, %v636
  %v659 = vadd.f32 %v609, %v637
  %v660 = vadd.f32 %v610, %v638
  %v661 = vadd.f32 %v611, %v639
  %v662 = vadd.f32 %v612, %v640
  %v663 = vadd.f32 %v613, %v641
  %v664 = vadd.f32 %v614, %v642
  %v665 = vadd.f32 %v615, %v643
  %v666 = vadd.f32 %v616, %v644
  %v667 = vadd.f32 %v617, %v645
  %v668 = vadd.f32 %v618, %v646
  %v669 = vadd.f32 %v619, %v647
  %v670 = vadd.f32 %v620, %v648
  %v671 = vadd.f32 %v621, %v649
  %v672 = vadd.f32 %v622, %v650
  %v673 = vadd.f32 %v623, %v651
  %v674 = vadd.f32 %v624, %v652
  %v675 = vadd.f32 %v625, %v653
  %v676 = vperm.slane %v654, 4
  %v677 = vperm.slane %v655, 4
  %v678 = vmul.f32 %v654, %v676
  %v679 = vmul.f32 %v655, %v677
  %v680 = vmul.f32 %v656, %v676
  %v681 = vmul.f32 %v657, %v677
  %v682 = vmul.f32 %v658, %v676
  %v683 = vmul.f32 %v659, %v677
  %v684 = vmul.f32 %v660, %v676
  %v685 = vmul.f32 %v661, %v677
  %v686 = vmul.f32 %v662, %v676
  %v687 = vmul.f32 %v663, %v677
  %v688 = vmul.f32 %v664, %v676
  %v689 = vmul.f32 %v665, %v677
  %v690 = vmul.f32 %v666, %v676
  %v691 = vmul.f32 %v667, %v677
  %v692 = vmul.f32 %v668, %v676
  %v693 = vmul.f32 %v669, %v677
  %v694 = vmul.f32 %v670, %v676
  %v695 = vmul.f32 %v671, %v677
  %v696 = vmul.f32 %v672, %v676
  %v697 = vmul.f32 %v673, %v677
  %v698 = vmul.f32 %v674, %v676
  %v699 = vmul.f32 %v675, %v677
  %s700 = scalar_lea.vmem %s3, 176
  %701 = vst [vmem:[%s700] sm:$0xf] %v654
  %702 = vst [vmem:[%s700 + $0x8] sm:$0xf] %v655
  %v725 = vrot.slane %v678, 1
  %v726 = vrot.slane %v680, 1
  %v727 = vsel %vm434, %v725, %v726
  %v728 = vrot.slane %v679, 1
  %v729 = vrot.slane %v681, 1
  %v730 = vsel %vm434, %v728, %v729
  %v731 = vrot.slane %v682, 1
  %v732 = vsel %vm434, %v726, %v731
  %v733 = vrot.slane %v683, 1
  %v734 = vsel %vm434, %v729, %v733
  %v735 = vrot.slane %v684, 1
  %v736 = vsel %vm434, %v731, %v735
  %v737 = vrot.slane %v685, 1
  %v738 = vsel %vm434, %v733, %v737
  %v739 = vrot.slane %v686, 1
  %v740 = vsel %vm434, %v735, %v739
  %v741 = vrot.slane %v687, 1
  %v742 = vsel %vm434, %v737, %v741
  %v743 = vrot.slane %v688, 1
  %v744 = vsel %vm434, %v739, %v743
  %v745 = vrot.slane %v689, 1
  %v746 = vsel %vm434, %v741, %v745
  %v747 = vrot.slane %v690, 1
  %v748 = vsel %vm434, %v743, %v747
  %v749 = vrot.slane %v691, 1
  %v750 = vsel %vm434, %v745, %v749
  %v751 = vrot.slane %v692, 1
  %v752 = vsel %vm434, %v747, %v751
  %v753 = vrot.slane %v693, 1
  %v754 = vsel %vm434, %v749, %v753
  %v755 = vrot.slane %v694, 1
  %v756 = vsel %vm434, %v751, %v755
  %v757 = vrot.slane %v695, 1
  %v758 = vsel %vm434, %v753, %v757
  %v759 = vrot.slane %v696, 1
  %v760 = vsel %vm434, %v755, %v759
  %v761 = vrot.slane %v697, 1
  %v762 = vsel %vm434, %v757, %v761
  %v763 = vrot.slane %v698, 1
  %v764 = vsel %vm434, %v759, %v763
  %v765 = vrot.slane %v699, 1
  %v766 = vsel %vm434, %v761, %v765
  %789 = vst [vmem:[%s700] sm:$0xf0] %v727
  %790 = vst [vmem:[%s700 + $0x8] sm:$0xf0] %v730
  %791 = vst [vmem:[%s700 + $0x10] sm:$0xff] %v732
  %792 = vst [vmem:[%s700 + $0x18] sm:$0xff] %v734
  %793 = vst [vmem:[%s700 + $0x20] sm:$0xff] %v736
  %794 = vst [vmem:[%s700 + $0x28] sm:$0xff] %v738
  %795 = vst [vmem:[%s700 + $0x30] sm:$0xff] %v740
  %796 = vst [vmem:[%s700 + $0x38] sm:$0xff] %v742
  %797 = vst [vmem:[%s700 + $0x40] sm:$0xff] %v744
  %798 = vst [vmem:[%s700 + $0x48] sm:$0xff] %v746
  %799 = vst [vmem:[%s700 + $0x50] sm:$0xff] %v748
  %800 = vst [vmem:[%s700 + $0x58] sm:$0xff] %v750
  %801 = vst [vmem:[%s700 + $0x60] sm:$0xff] %v752
  %802 = vst [vmem:[%s700 + $0x68] sm:$0xff] %v754
  %803 = vst [vmem:[%s700 + $0x70] sm:$0xff] %v756
  %804 = vst [vmem:[%s700 + $0x78] sm:$0xff] %v758
  %805 = vst [vmem:[%s700 + $0x80] sm:$0xff] %v760
  %806 = vst [vmem:[%s700 + $0x88] sm:$0xff] %v762
  %807 = vst [vmem:[%s700 + $0x90] sm:$0xff] %v764
  %808 = vst [vmem:[%s700 + $0x98] sm:$0xff] %v766
  %809 = vst [vmem:[%s700 + $0xa0] sm:$0xf] %v763
  %810 = vst [vmem:[%s700 + $0xa8] sm:$0xf] %v765
  %811 = vst [vmem:[%s700 + $0xa0] sm:$0xf0] 0.0
  %812 = vst [vmem:[%s700 + $0xa8] sm:$0xf0] 0.0
  // Predicated region
  $region14: #{end2end_forward.1} parent=0 // pred_check
    _
  $region15: #{end2end_forward.1} parent=0 // pred_check_branch
    %814 = sbr.rel (0) target = $region17
  $region16: #{end2end_forward.1} parent=0 // pred_region
    _
  $region17: #{end2end_forward.1} parent=0 // pred_fallthru
    _
  // Predicated region
  $region18: #{end2end_forward.1} parent=0 // pred_check
    _
  $region19: #{end2end_forward.1} parent=0 // pred_check_branch
    %816 = sbr.rel (0) target = $region21
  $region20: #{end2end_forward.1} parent=0 // pred_region
    _
  $region21: #{end2end_forward.1} parent=0 // pred_fallthru
    _

</llo_original>
